<compile_context>
chip_gen: v7x
topology: tpu7x:2x2x1
jax: 0.10.0
libtpu: 0.0.40
codegen_flags: <defaults>
</compile_context>

<pallas_src>
import functools

import jax
import jax.numpy as jnp
from jax.experimental import pallas as pl
from jax.experimental.pallas import tpu as pltpu

_LANES = 128
_MAX_BLOCK_ROWS = 4096   # 4096*128*4B = 2 MiB/block; x4 (in+out, dbl-buffered) = 8 MiB VMEM
_MIN_SPLIT_ROWS = 2048   # above this, force >= 2 grid steps (v7x has 2 TensorCores)


def _clip_boxes_kernel(x_ref, out_ref, *, width, height):
    # x_ref/out_ref: (block_rows, 128) tile of the flattened boxes slab.
    x = x_ref[...]
    # Coordinate index of each lane: flat_index % 4 == lane % 4 (128 % 4 == 0).
    lane = jax.lax.broadcasted_iota(jnp.int32, x.shape, dimension=1) & 3
    zero = jnp.zeros((), x.dtype)
    hi = jnp.where(lane == 2,
                   jnp.asarray(width, x.dtype),
                   jnp.asarray(height, x.dtype))
    # lanes 0,1 (x1,y1): clamp to min 0; lanes 2,3 (x2,y2): clamp to max W/H.
    out_ref[...] = jnp.where(lane < 2, jnp.maximum(x, zero), jnp.minimum(x, hi))


def _choose_block_rows(rows):
    """Pick a block row count: big blocks, >=2 grid steps for large slabs."""
    if rows <= _MIN_SPLIT_ROWS:
        # Single block == full array extent (the (8,128) constraint is waived
        # when block_shape equals the full array dims).
        return rows
    block = min(_MAX_BLOCK_ROWS, (rows + 1) // 2)
    return ((block + 7) // 8) * 8  # multiple of 8 sublanes


def clip_boxes(boxes, img):
    """Pallas equivalent of ClipBoxes.forward(boxes, img) (functional)."""
    B, N, C = boxes.shape
    assert C == 4, "boxes last dim must be 4 (x1, y1, x2, y2)"
    _, _, height, width = img.shape
    dtype = boxes.dtype

    # --- lane-dense reshape: (B, N, 4) -> (rows, 128) ------------------------
    total = B * N * 4
    rows = (total + _LANES - 1) // _LANES
    pad = rows * _LANES - total                 # <= 127 elements, usually 0

    flat = boxes.reshape(-1)
    if pad:
        flat = jnp.pad(flat, (0, pad))
    x2d = flat.reshape(rows, _LANES)

    block_rows = _choose_block_rows(rows)
    grid = ((rows + block_rows - 1) // block_rows,)

    kernel = functools.partial(_clip_boxes_kernel, width=width, height=height)

    out2d = pl.pallas_call(
        kernel,
        out_shape=jax.ShapeDtypeStruct((rows, _LANES), dtype),
        grid_spec=pltpu.PrefetchScalarGridSpec(
            num_scalar_prefetch=0,
            grid=grid,
            in_specs=[pl.BlockSpec((block_rows, _LANES), lambda i: (i, 0))],
            out_specs=pl.BlockSpec((block_rows, _LANES), lambda i: (i, 0)),
        ),
        compiler_params=pltpu.CompilerParams(
            dimension_semantics=("parallel",),
        ),
        cost_estimate=pl.CostEstimate(
            flops=2 * rows * _LANES,
            transcendentals=0,
            bytes_accessed=2 * rows * _LANES * x2d.dtype.itemsize,
        ),
    )(x2d)

    out_flat = out2d.reshape(-1)
    if pad:
        out_flat = out_flat[:total]
    return out_flat.reshape(B, N, 4)


if __name__ == "__main__":
    key = jax.random.PRNGKey(0)
    kb, _ = jax.random.split(key)

    B, N = 2, 8
    Cimg, H, W = 4, 16, 16

    # Boxes spanning negative and > image-size values so clamping is exercised.
    boxes = jax.random.uniform(kb, (B, N, 4), dtype=jnp.float32,
                               minval=-10.0, maxval=30.0)
    img = jnp.zeros((B, Cimg, H, W), dtype=jnp.float32)

    out = jax.jit(clip_boxes)(boxes, img)
    out = jax.block_until_ready(out)

    # Reference check in plain JAX (mirrors the PyTorch semantics).
    ref = boxes
    ref = ref.at[:, :, 0].set(jnp.maximum(ref[:, :, 0], 0.0))
    ref = ref.at[:, :, 1].set(jnp.maximum(ref[:, :, 1], 0.0))
    ref = ref.at[:, :, 2].set(jnp.minimum(ref[:, :, 2], float(W)))
    ref = ref.at[:, :, 3].set(jnp.minimum(ref[:, :, 3], float(H)))
    assert jnp.allclose(out, ref), "mismatch vs reference"

    print("KERNEL_OK")
</pallas_src>

<mosaic_0001>
module attributes {stable_mosaic.version = 11 : i64} {
  func.func @_clip_boxes_kernel(%arg0: i32, %arg1: memref<1x128xf32, #tpu.memory_space<vmem>>, %arg2: memref<1x128xf32, #tpu.memory_space<vmem>>) attributes {dimension_semantics = [#tpu.dimension_semantics<parallel>], iteration_bounds = array<i64: 1>, scalar_prefetch = 0 : i64, scratch_operands = 0 : i64, tpu.core_type = #tpu.core_type<tc>, window_params = [{transform_indices = @transform_0, window_bounds = array<i64: 1, 128>}, {transform_indices = @transform_1, window_bounds = array<i64: 1, 128>}]} {
    %c0 = arith.constant 0 : index
    %c0_0 = arith.constant 0 : index
    %0 = vector.load %arg1[%c0, %c0_0] : memref<1x128xf32, #tpu.memory_space<vmem>>, vector<1x128xf32>
    %1 = tpu.iota {dimensions = array<i32: 1>} : vector<1x128xi32>
    %c3_i32 = arith.constant 3 : i32
    %2 = vector.broadcast %c3_i32 : i32 to vector<1x128xi32>
    %3 = arith.andi %1, %2 : vector<1x128xi32>
    %c2_i32 = arith.constant 2 : i32
    %4 = vector.broadcast %c2_i32 : i32 to vector<1x128xi32>
    %5 = arith.cmpi eq, %3, %4 : vector<1x128xi32>
    %cst = arith.constant 1.600000e+01 : f32
    %cst_1 = arith.constant 1.600000e+01 : f32
    %6 = vector.broadcast %cst : f32 to vector<1x128xf32>
    %7 = vector.broadcast %cst_1 : f32 to vector<1x128xf32>
    %8 = arith.select %5, %6, %7 : vector<1x128xi1>, vector<1x128xf32>
    %c2_i32_2 = arith.constant 2 : i32
    %9 = vector.broadcast %c2_i32_2 : i32 to vector<1x128xi32>
    %10 = arith.cmpi slt, %3, %9 : vector<1x128xi32>
    %cst_3 = arith.constant 0.000000e+00 : f32
    %11 = vector.broadcast %cst_3 : f32 to vector<1x128xf32>
    %12 = arith.maximumf %0, %11 : vector<1x128xf32>
    %13 = arith.minimumf %0, %8 : vector<1x128xf32>
    %14 = arith.select %10, %12, %13 : vector<1x128xi1>, vector<1x128xf32>
    %c0_4 = arith.constant 0 : index
    %c0_5 = arith.constant 0 : index
    %15 = vector.load %arg2[%c0_4, %c0_5] : memref<1x128xf32, #tpu.memory_space<vmem>>, vector<1x128xf32>
    tpu.vector_store %arg2[%c0_4, %c0_5], %14 {strides = array<i32>} : memref<1x128xf32, #tpu.memory_space<vmem>>, vector<1x128xf32>,
    return
  }
  func.func @transform_0(%arg0: i32) -> (i32, i32) {
    %c0_i32 = arith.constant 0 : i32
    %c0_i32_0 = arith.constant 0 : i32
    return %arg0, %c0_i32 : i32, i32
  }
  func.func @transform_1(%arg0: i32) -> (i32, i32) {
    %c0_i32 = arith.constant 0 : i32
    %c0_i32_0 = arith.constant 0 : i32
    return %arg0, %c0_i32 : i32, i32
  }
}

</mosaic_0001>

<llo_original>
// kernel: clip_boxes.1
$region0: #{clip_boxes.1}
  #allocation0 [shape = 'u32[]', space=smem, size = 0x4, offset = 0x4, fixed_abs, tag = 'smem constant byte address 0x4 - core index']
  #allocation1 [shape = 'u32[144,128]{1,0:T(1,128)}', space=vmem, size = 0x12000, scoped, tag = 'internal scratch']
  %s0 = inlined_call_operand.vmem [shape: f32[1,128], index: 0, kind: input, shape index: {}]
  %s1 = inlined_call_operand.vmem [shape: f32[1,128], index: 1, kind: output, shape index: {}]
  %s2 = sld [smem:[#allocation0]]
  $region14: #{clip_boxes.1} parent=0
    _
  %s4 = ssub.s32 1, %s2
  %s5 = scalar_select 0, %s4, %s2
  // Predicated region
  $region2: #{clip_boxes.1} parent=0 // pred_check
    _
  $region3: #{clip_boxes.1} parent=0 // pred_check_branch
    %7 = sbr.rel (0) target = $region5
  $region4: #{clip_boxes.1} parent=0 // pred_region
    _
  $region5: #{clip_boxes.1} parent=0 // pred_fallthru
    _
  %v8 = vld [vmem:[%s0] sm:$0x1]
  %v9 = vlaneseq
  %v10 = vand.u32 %v9, 127
  %v11 = vand.u32 %v10, 3
  %vm12 = vcmp.lt.s32.totalorder %v11, 2
  %v13 = vmax.f32 %v8, 0.0
  %v14 = vmin.f32 %v8, 16.0
  %v15 = vsel %vm12, %v13, %v14
  %16 = vst [vmem:[%s1] sm:$0x1] %v15
  // Predicated region
  $region6: #{clip_boxes.1} parent=0 // pred_check
    _
  $region7: #{clip_boxes.1} parent=0 // pred_check_branch
    %18 = sbr.rel (0) target = $region9
  $region8: #{clip_boxes.1} parent=0 // pred_region
    _
  $region9: #{clip_boxes.1} parent=0 // pred_fallthru
    _
  // Predicated region
  $region10: #{clip_boxes.1} parent=0 // pred_check
    _
  $region11: #{clip_boxes.1} parent=0 // pred_check_branch
    %20 = sbr.rel (0) target = $region13
  $region12: #{clip_boxes.1} parent=0 // pred_region
    _
  $region13: #{clip_boxes.1} parent=0 // pred_fallthru
    _

</llo_original>
